<compile_context>
chip_gen: v7x
topology: tpu7x:2x2x1
jax: 0.10.0
libtpu: 0.0.40
codegen_flags: <defaults>
</compile_context>

<pallas_src>
import functools

import jax
import jax.numpy as jnp
from jax.experimental import pallas as pl
from jax.experimental.pallas import tpu as pltpu

_HIDDEN = 64
_LANE = 128


def _round_up(n, m):
    return ((n + m - 1) // m) * m


def _tpu_topology():
    """Best-effort (vmem_capacity_bytes, tensorcores_per_chip). Safe fallbacks."""
    vmem_cap = 64 << 20   # conservative: v7x per-TC physical VMEM
    num_cores = 1
    try:
        info = pltpu.get_tpu_info()
        vmem_cap = int(getattr(info, "vmem_capacity_bytes", vmem_cap)) or vmem_cap
        for attr in ("num_tensorcores", "num_cores", "tensorcore_count",
                     "cores_per_chip"):
            v = getattr(info, attr, None)
            if v:
                num_cores = int(v)
                break
    except Exception:
        pass
    return vmem_cap, max(1, num_cores)


def _vmem_need_bytes(tb, L, H, R, in_bytes, out_bytes):
    """Lane-padded VMEM footprint estimate for one pipeline configuration."""
    Lp = _round_up(L, _LANE)
    Hp = _round_up(H, _LANE)
    Rp = _round_up(R, _LANE)
    return (
        2 * tb * Lp * in_bytes            # x tiles (double-buffered, lane-padded)
        + 2 * tb * Rp * out_bytes         # out tiles (double-buffered)
        + tb * (Hp + Rp) * 4              # f32 h / o intermediates
        + 2 * (L * Hp + Hp + H * Rp + Rp) * 4   # resident weights (double-buffered)
    )


def _mlp_kernel(x_ref, w1_ref, b1_ref, w2_ref, b2_ref, o_ref):
    # Fused 2-layer MLP on one batch tile: (tb, L) -> (tb, R), f32 accumulation.
    x = x_ref[...]
    h = jnp.dot(x, w1_ref[...], preferred_element_type=jnp.float32) + b1_ref[...]
    h = jnp.maximum(h, 0.0)
    o = jnp.dot(h, w2_ref[...], preferred_element_type=jnp.float32) + b2_ref[...]
    o_ref[...] = jnp.maximum(o, 0.0).astype(o_ref.dtype)


@functools.partial(jax.jit, static_argnames=("block_b", "out_dtype"))
def latent_en_translator_fwd(x, w1, b1, w2, b2, *, block_b=8192,
                             out_dtype=jnp.bfloat16):
    """x: (B, latent_dim) f32 or bf16. w1: (latent_dim, 64), b1: (64,) or (1, 64),
    w2: (64, repres_dim), b2: (repres_dim,) or (1, repres_dim).
    Returns (B, repres_dim) in `out_dtype` (bf16 default; f32 accumulation)."""
    B, L = x.shape
    H = w1.shape[1]
    R = w2.shape[1]

    # Robustness: accept (H,)-shaped biases from a naive torch port (free inside jit).
    if b1.ndim == 1:
        b1 = b1.reshape(1, -1)
    if b2.ndim == 1:
        b2 = b2.reshape(1, -1)

    vmem_cap, num_cores = _tpu_topology()
    in_bytes = jnp.dtype(x.dtype).itemsize
    out_bytes = jnp.dtype(out_dtype).itemsize

    # --- Batch tile selection ----------------------------------------------
    # Target at least 2 grid steps per TensorCore (balanced across cores) while
    # honouring block_b, but never shrink below ~1024 rows: the per-step
    # pipeline overhead (~0.35 us) dominates for tiny tiles.
    steps = max(pl.cdiv(B, block_b), 2 * num_cores)
    if num_cores > 1:
        steps = _round_up(steps, num_cores)      # balanced / even step count
    tb = _round_up(pl.cdiv(B, steps), 8)
    floor = min(1024, _round_up(B, 8))           # don't over-split small batches
    tb = min(max(tb, floor), max(block_b, 8))
    tb = min(tb, _round_up(B, 8))
    tb = max(8, _round_up(tb, 8))

    # --- Generation-aware VMEM budget; shrink the tile if it would not fit. --
    slack = 2 << 20
    budget = int(0.75 * vmem_cap)
    while _vmem_need_bytes(tb, L, H, R, in_bytes, out_bytes) + slack > budget and tb > 8:
        tb = max(8, _round_up(tb // 2, 8))
    need = _vmem_need_bytes(tb, L, H, R, in_bytes, out_bytes)
    vmem_limit = int(min(budget, max(need + slack, 16 << 20)))

    grid = (pl.cdiv(B, tb),)

    out = pl.pallas_call(
        _mlp_kernel,
        out_shape=jax.ShapeDtypeStruct((B, R), out_dtype),
        grid_spec=pltpu.PrefetchScalarGridSpec(
            num_scalar_prefetch=0,
            grid=grid,
            in_specs=[
                pl.BlockSpec((tb, L), lambda i: (i, 0)),   # x tile (row-parallel)
                # Weights/biases: constant index_map -> fetched once and kept
                # resident; default (double-buffered) pipeline mode per review.
                pl.BlockSpec((L, H), lambda i: (0, 0)),
                pl.BlockSpec((1, H), lambda i: (0, 0)),
                pl.BlockSpec((H, R), lambda i: (0, 0)),
                pl.BlockSpec((1, R), lambda i: (0, 0)),
            ],
            out_specs=pl.BlockSpec((tb, R), lambda i: (i, 0)),
        ),
        compiler_params=pltpu.CompilerParams(
            # Batch axis is embarrassingly parallel; on v7x this lets the two
            # TensorCores split the (balanced, >=2-per-core) grid steps.
            dimension_semantics=(pltpu.PARALLEL,),
            vmem_limit_bytes=vmem_limit,
        ),
    )(x, w1, b1, w2, b2)

    return out


def init_params(key, latent_dim=16, repres_dim=128):
    """Deterministic init mimicking torch.nn.Linear (uniform +/- 1/sqrt(fan_in)).
    Weights are stored as (in, out) = W^T of the PyTorch weight."""
    hidden = _HIDDEN
    k1, k2, k3, k4 = jax.random.split(key, 4)
    bound1 = 1.0 / (latent_dim ** 0.5)
    bound2 = 1.0 / (hidden ** 0.5)
    w1 = jax.random.uniform(k1, (latent_dim, hidden), jnp.float32, -bound1, bound1)
    b1 = jax.random.uniform(k2, (1, hidden), jnp.float32, -bound1, bound1)
    w2 = jax.random.uniform(k3, (hidden, repres_dim), jnp.float32, -bound2, bound2)
    b2 = jax.random.uniform(k4, (1, repres_dim), jnp.float32, -bound2, bound2)
    return w1, b1, w2, b2


def _ref(x, w1, b1, w2, b2):
    return jnp.maximum(jnp.maximum(x @ w1 + b1.reshape(1, -1), 0.0) @ w2
                       + b2.reshape(1, -1), 0.0)


if __name__ == "__main__":
    latent_dim, repres_dim = 16, 128

    key = jax.random.PRNGKey(0)
    kx, kx2, kx3, kp = jax.random.split(key, 4)
    w1, b1, w2, b2 = init_params(kp, latent_dim, repres_dim)

    # 1) Small smoke test, exact torch dtype (f32 out), tight tolerance.
    x = jax.random.normal(kx, (8, latent_dim), jnp.float32)
    out = jax.block_until_ready(
        latent_en_translator_fwd(x, w1, b1, w2, b2, out_dtype=jnp.float32))
    assert out.shape == (8, repres_dim) and out.dtype == jnp.float32
    assert jnp.allclose(out, _ref(x, w1, b1, w2, b2), atol=1e-5, rtol=1e-5)

    # 2) Ragged batch, default bf16 output (f32 accumulation), 1-D bias robustness.
    x2 = jax.random.normal(kx2, (200, latent_dim), jnp.float32)
    out2 = jax.block_until_ready(
        latent_en_translator_fwd(x2, w1, b1.reshape(-1), w2, b2.reshape(-1)))
    assert out2.shape == (200, repres_dim) and out2.dtype == jnp.bfloat16
    assert jnp.allclose(out2.astype(jnp.float32), _ref(x2, w1, b1, w2, b2),
                        atol=2e-2, rtol=2e-2)

    # 3) Multi-step grid with a masked partial last block (explicit small block_b).
    x3 = jax.random.normal(kx3, (2200, latent_dim), jnp.float32)
    out3 = jax.block_until_ready(
        latent_en_translator_fwd(x3, w1, b1, w2, b2, block_b=1024))
    assert out3.shape == (2200, repres_dim)
    assert jnp.allclose(out3.astype(jnp.float32), _ref(x3, w1, b1, w2, b2),
                        atol=2e-2, rtol=2e-2)

    print("KERNEL_OK")
</pallas_src>

<mosaic_0001>
module attributes {stable_mosaic.version = 11 : i64} {
  func.func @_mlp_kernel(%arg0: i32, %arg1: memref<8x16xf32, #tpu.memory_space<vmem>>, %arg2: memref<16x64xf32, #tpu.memory_space<vmem>>, %arg3: memref<1x64xf32, #tpu.memory_space<vmem>>, %arg4: memref<64x128xf32, #tpu.memory_space<vmem>>, %arg5: memref<1x128xf32, #tpu.memory_space<vmem>>, %arg6: memref<8x128xf32, #tpu.memory_space<vmem>>) attributes {dimension_semantics = [#tpu.dimension_semantics<parallel>], iteration_bounds = array<i64: 1>, scalar_prefetch = 0 : i64, scratch_operands = 0 : i64, tpu.core_type = #tpu.core_type<tc>, window_params = [{transform_indices = @transform_0, window_bounds = array<i64: 8, 16>}, {pipeline_mode = #tpu.pipeline_mode<synchronous>, transform_indices = @transform_1, window_bounds = array<i64: 16, 64>}, {pipeline_mode = #tpu.pipeline_mode<synchronous>, transform_indices = @transform_2, window_bounds = array<i64: 1, 64>}, {pipeline_mode = #tpu.pipeline_mode<synchronous>, transform_indices = @transform_3, window_bounds = array<i64: 64, 128>}, {pipeline_mode = #tpu.pipeline_mode<synchronous>, transform_indices = @transform_4, window_bounds = array<i64: 1, 128>}, {transform_indices = @transform_5, window_bounds = array<i64: 8, 128>}]} {
    %c0 = arith.constant 0 : index
    %c0_0 = arith.constant 0 : index
    %0 = vector.load %arg1[%c0, %c0_0] : memref<8x16xf32, #tpu.memory_space<vmem>>, vector<8x16xf32>
    %c0_1 = arith.constant 0 : index
    %c0_2 = arith.constant 0 : index
    %1 = vector.load %arg2[%c0_1, %c0_2] : memref<16x64xf32, #tpu.memory_space<vmem>>, vector<16x64xf32>
    %cst = arith.constant dense<0.000000e+00> : vector<8x64xf32>
    %2 = tpu.matmul %0, %1, %cst {dimension_numbers = #tpu.dot_dimension_numbers<[1], [0], [0], [1], [0, 0, 1, 1], [], []>} : vector<8x16xf32>, vector<16x64xf32>, vector<8x64xf32> -> vector<8x64xf32>
    %c0_3 = arith.constant 0 : index
    %c0_4 = arith.constant 0 : index
    %3 = vector.load %arg3[%c0_3, %c0_4] : memref<1x64xf32, #tpu.memory_space<vmem>>, vector<1x64xf32>
    %4 = vector.broadcast %3 : vector<1x64xf32> to vector<8x64xf32>
    %5 = arith.addf %2, %4 : vector<8x64xf32>
    %cst_5 = arith.constant 0.000000e+00 : f32
    %6 = vector.broadcast %cst_5 : f32 to vector<8x64xf32>
    %7 = arith.maximumf %5, %6 : vector<8x64xf32>
    %c0_6 = arith.constant 0 : index
    %c0_7 = arith.constant 0 : index
    %8 = vector.load %arg4[%c0_6, %c0_7] : memref<64x128xf32, #tpu.memory_space<vmem>>, vector<64x128xf32>
    %cst_8 = arith.constant dense<0.000000e+00> : vector<8x128xf32>
    %9 = tpu.matmul %7, %8, %cst_8 {dimension_numbers = #tpu.dot_dimension_numbers<[1], [0], [0], [1], [0, 0, 1, 1], [], []>} : vector<8x64xf32>, vector<64x128xf32>, vector<8x128xf32> -> vector<8x128xf32>
    %c0_9 = arith.constant 0 : index
    %c0_10 = arith.constant 0 : index
    %10 = vector.load %arg5[%c0_9, %c0_10] : memref<1x128xf32, #tpu.memory_space<vmem>>, vector<1x128xf32>
    %11 = vector.broadcast %10 : vector<1x128xf32> to vector<8x128xf32>
    %12 = arith.addf %9, %11 : vector<8x128xf32>
    %cst_11 = arith.constant 0.000000e+00 : f32
    %13 = vector.broadcast %cst_11 : f32 to vector<8x128xf32>
    %14 = arith.maximumf %12, %13 : vector<8x128xf32>
    %c0_12 = arith.constant 0 : index
    %c0_13 = arith.constant 0 : index
    %15 = vector.load %arg6[%c0_12, %c0_13] : memref<8x128xf32, #tpu.memory_space<vmem>>, vector<8x128xf32>
    tpu.vector_store %arg6[%c0_12, %c0_13], %14 {strides = array<i32>} : memref<8x128xf32, #tpu.memory_space<vmem>>, vector<8x128xf32>,
    return
  }
  func.func @transform_0(%arg0: i32) -> (i32, i32) {
    %c0_i32 = arith.constant 0 : i32
    %c0_i32_0 = arith.constant 0 : i32
    return %arg0, %c0_i32 : i32, i32
  }
  func.func @transform_1(%arg0: i32) -> (i32, i32) {
    %c0_i32 = arith.constant 0 : i32
    %c0_i32_0 = arith.constant 0 : i32
    %c0_i32_1 = arith.constant 0 : i32
    return %c0_i32, %c0_i32_0 : i32, i32
  }
  func.func @transform_2(%arg0: i32) -> (i32, i32) {
    %c0_i32 = arith.constant 0 : i32
    %c0_i32_0 = arith.constant 0 : i32
    %c0_i32_1 = arith.constant 0 : i32
    return %c0_i32, %c0_i32_0 : i32, i32
  }
  func.func @transform_3(%arg0: i32) -> (i32, i32) {
    %c0_i32 = arith.constant 0 : i32
    %c0_i32_0 = arith.constant 0 : i32
    %c0_i32_1 = arith.constant 0 : i32
    return %c0_i32, %c0_i32_0 : i32, i32
  }
  func.func @transform_4(%arg0: i32) -> (i32, i32) {
    %c0_i32 = arith.constant 0 : i32
    %c0_i32_0 = arith.constant 0 : i32
    %c0_i32_1 = arith.constant 0 : i32
    return %c0_i32, %c0_i32_0 : i32, i32
  }
  func.func @transform_5(%arg0: i32) -> (i32, i32) {
    %c0_i32 = arith.constant 0 : i32
    %c0_i32_0 = arith.constant 0 : i32
    return %arg0, %c0_i32 : i32, i32
  }
}

</mosaic_0001>

<llo_original>
// kernel: latent_en_translator_fwd.1
$region0: #{latent_en_translator_fwd.1}
  #allocation0 [shape = 'u32[]', space=smem, size = 0x4, offset = 0x4, fixed_abs, tag = 'smem constant byte address 0x4 - core index']
  #allocation1 [shape = 'u32[144,128]{1,0:T(1,128)}', space=vmem, size = 0x12000, scoped, tag = 'internal scratch']
  %s0 = inlined_call_operand.hbm [shape: f32[8,16], index: 0, kind: input, shape index: {}]
  %s1 = inlined_call_operand.hbm [shape: f32[16,64], index: 1, kind: input, shape index: {}]
  %s2 = inlined_call_operand.vmem [shape: f32[1,64], index: 2, kind: input, shape index: {}]
  %s3 = inlined_call_operand.hbm [shape: f32[64,128], index: 3, kind: input, shape index: {}]
  %s4 = inlined_call_operand.vmem [shape: f32[1,128], index: 4, kind: input, shape index: {}]
  %s5 = inlined_call_operand.hbm [shape: f32[8,128], index: 5, kind: output, shape index: {}]
  %s6 = sld [smem:[#allocation0]]
  $region42: #{latent_en_translator_fwd.1} parent=0
    _
  %s8 = ssub.s32 1, %s6
  %s9 = scalar_select 0, %s8, %s6
  $region1: #{latent_en_translator_fwd.1} parent=0
    #allocation2 [shape = 'u8[4096]{0}', space=vmem, size = 0x1000, scoped, tag = 'input window, operand 0, single buffered']
    #allocation3 [shape = 's32[1]{0}', space=sflag, size = 0x4, scoped, tag = 'scoped memory for latent_en_translator_fwd.1']
    #allocation4 [shape = 's32[1]{0}', space=sflag, size = 0x4, scoped, tag = 'scoped memory for latent_en_translator_fwd.1']
    #allocation5 [shape = 'u8[8192]{0}', space=vmem, size = 0x2000, scoped, tag = 'input window, operand 1, single buffered']
    #allocation6 [shape = 's32[1]{0}', space=sflag, size = 0x4, scoped, tag = 'scoped memory for latent_en_translator_fwd.1']
    #allocation7 [shape = 'u8[32768]{0}', space=vmem, size = 0x8000, scoped, tag = 'input window, operand 3, single buffered']
    #allocation8 [shape = 'u8[4096]{0}', space=vmem, size = 0x1000, scoped, tag = 'output window, operand 0, single buffered']
    %10 = vsyncpa [#allocation3], 0
    %11 = vsyncpa [#allocation6], 0
    %12 = vsyncpa [#allocation4], 0
    // Predicated region
    $region2: #{latent_en_translator_fwd.1} parent=1 // pred_check
      _
    $region3: #{latent_en_translator_fwd.1} parent=1 // pred_check_branch
      %14 = sbr.rel (0) target = $region5
    $region4: #{latent_en_translator_fwd.1} parent=1 // pred_region
      %s16 = ssub.s32 128, 128
      %17 = vsyncadd [#allocation3], %s16
      %s19 = sshll.u32 [#allocation2], 4
      %s20 = int_to_ptr.vmem [resolvable:$true] %s19
      %22 = dma.hbm_to_vmem [thread:$0]  %s0, 128, %s20, [#allocation3]
    $region5: #{latent_en_translator_fwd.1} parent=1 // pred_fallthru
      _
    // Predicated region
    $region6: #{latent_en_translator_fwd.1} parent=1 // pred_check
      _
    $region7: #{latent_en_translator_fwd.1} parent=1 // pred_check_branch
      %24 = sbr.rel (0) target = $region9
    $region8: #{latent_en_translator_fwd.1} parent=1 // pred_region
      %s26 = ssub.s32 256, 256
      %27 = vsyncadd [#allocation6], %s26
      %s28 = sshll.u32 [#allocation5], 4
      %s29 = int_to_ptr.vmem [resolvable:$true] %s28
      %34 = dma.hbm_to_vmem [thread:$0]  %s1, 256, %s29, [#allocation6], 128, 128, 8
    $region9: #{latent_en_translator_fwd.1} parent=1 // pred_fallthru
      _
    // Predicated region
    $region10: #{latent_en_translator_fwd.1} parent=1 // pred_check
      _
    $region11: #{latent_en_translator_fwd.1} parent=1 // pred_check_branch
      %36 = sbr.rel (0) target = $region13
    $region12: #{latent_en_translator_fwd.1} parent=1 // pred_region
      _
    $region13: #{latent_en_translator_fwd.1} parent=1 // pred_fallthru
      _
    // Predicated region
    $region14: #{latent_en_translator_fwd.1} parent=1 // pred_check
      _
    $region15: #{latent_en_translator_fwd.1} parent=1 // pred_check_branch
      %38 = sbr.rel (0) target = $region17
    $region16: #{latent_en_translator_fwd.1} parent=1 // pred_region
      %s40 = ssub.s32 1024, 1024
      %41 = vsyncadd [#allocation6], %s40
      %s42 = sshll.u32 [#allocation7], 4
      %s43 = int_to_ptr.vmem [resolvable:$true] %s42
      %48 = dma.hbm_to_vmem [thread:$0]  %s3, 1024, %s43, [#allocation6], 128, 128, 8
    $region17: #{latent_en_translator_fwd.1} parent=1 // pred_fallthru
      _
    // Predicated region
    $region18: #{latent_en_translator_fwd.1} parent=1 // pred_check
      _
    $region19: #{latent_en_translator_fwd.1} parent=1 // pred_check_branch
      %50 = sbr.rel (0) target = $region21
    $region20: #{latent_en_translator_fwd.1} parent=1 // pred_region
      _
    $region21: #{latent_en_translator_fwd.1} parent=1 // pred_fallthru
      _
    // Predicated region
    $region22: #{latent_en_translator_fwd.1} parent=1 // pred_check
      _
    $region23: #{latent_en_translator_fwd.1} parent=1 // pred_check_branch
      %52 = sbr.rel (0) target = $region25
    $region24: #{latent_en_translator_fwd.1} parent=1 // pred_region
      %53 = dma.done [#allocation3], 128
    $region25: #{latent_en_translator_fwd.1} parent=1 // pred_fallthru
      _
    // Predicated region
    $region26: #{latent_en_translator_fwd.1} parent=1 // pred_check
      _
    $region27: #{latent_en_translator_fwd.1} parent=1 // pred_check_branch
      %55 = sbr.rel (0) target = $region29
    $region28: #{latent_en_translator_fwd.1} parent=1 // pred_region
      %56 = dma.done [#allocation6], 256
    $region29: #{latent_en_translator_fwd.1} parent=1 // pred_fallthru
      _
    // Predicated region
    $region30: #{latent_en_translator_fwd.1} parent=1 // pred_check
      _
    $region31: #{latent_en_translator_fwd.1} parent=1 // pred_check_branch
      %58 = sbr.rel (0) target = $region33
    $region32: #{latent_en_translator_fwd.1} parent=1 // pred_region
      %59 = dma.done [#allocation6], 1024
    $region33: #{latent_en_translator_fwd.1} parent=1 // pred_fallthru
      _
    %v60 = vld [vmem:[#allocation2] sm:$0xff]
    %v61 = vld [vmem:[#allocation5] sm:$0xff]
    %v62 = vld [vmem:[#allocation5 + $0x8] sm:$0xff]
    %v63 = vld [vmem:[%s2] sm:$0x1]
    %v65 = vlaneseq
    %v66 = vshrl.u32 %v65, 7
    %v67 = vsub.s32 0, %v66
    %v68 = vrot.slane %v63, %v67
    %vm70 = vcmask 130048
    %v72 = vsel %vm70, %v60, 0
    %74 = vmatprep.subr.mxu0 0.0
    %75 = vmatpush1.msra.mxu0 %v61
    %76 = vmatprep.subr.mxu0 0.0
    %77 = vmatpush1.msra.mxu0 %v62
    %78 = vmatprep.subr.mxu0 0.0
    %79 = vmatpush1.msra.mxu0 0.0
    %80 = vmatprep.subr.mxu0 0.0
    %81 = vmatpush1.msra.mxu0 0.0
    %82 = vmatprep.subr.mxu0 0.0
    %83 = vmatpush1.msra.mxu0 0.0
    %84 = vmatprep.subr.mxu0 0.0
    %85 = vmatpush1.msra.mxu0 0.0
    %86 = vmatprep.subr.mxu0 0.0
    %87 = vmatpush1.msra.mxu0 0.0
    %88 = vmatprep.subr.mxu0 0.0
    %89 = vmatpush1.msra.mxu0 0.0
    %90 = vmatprep.subr.mxu0 0.0
    %91 = vmatpush1.msra.mxu0 0.0
    %92 = vmatprep.subr.mxu0 0.0
    %93 = vmatpush1.msra.mxu0 0.0
    %94 = vmatprep.subr.mxu0 0.0
    %95 = vmatpush1.msra.mxu0 0.0
    %96 = vmatprep.subr.mxu0 0.0
    %97 = vmatpush1.msra.mxu0 0.0
    %98 = vmatprep.subr.mxu0 0.0
    %99 = vmatpush1.msra.mxu0 0.0
    %100 = vmatprep.subr.mxu0 0.0
    %101 = vmatpush1.msra.mxu0 0.0
    %102 = vmatprep.subr.mxu0 0.0
    %103 = vmatpush1.msra.mxu0 0.0
    %104 = vmatprep.subr.mxu0 0.0
    %105 = vmatpush1.msra.mxu0 0.0
    %106 = vmatprep.subr.mxu0 0.0
    %107 = vmatpush1.msra.mxu0 0.0
    %108 = vmatprep.subr.mxu0 0.0
    %109 = vmatpush1.msra.mxu0 0.0
    %110 = vmatprep.subr.mxu0 0.0
    %111 = vmatpush1.msra.mxu0 0.0
    %112 = vmatprep.subr.mxu0 0.0
    %113 = vmatpush1.msra.mxu0 0.0
    %114 = vmatprep.subr.mxu0 0.0
    %115 = vmatpush1.msra.mxu0 0.0
    %116 = vmatprep.subr.mxu0 0.0
    %117 = vmatpush1.msra.mxu0 0.0
    %118 = vmatprep.subr.mxu0 0.0
    %119 = vmatpush1.msra.mxu0 0.0
    %120 = vmatprep.subr.mxu0 0.0
    %121 = vmatpush1.msra.mxu0 0.0
    %122 = vmatprep.subr.mxu0 0.0
    %123 = vmatpush1.msra.mxu0 0.0
    %124 = vmatprep.subr.mxu0 0.0
    %125 = vmatpush1.msra.mxu0 0.0
    %126 = vmatprep.subr.mxu0 0.0
    %127 = vmatpush1.msra.mxu0 0.0
    %128 = vmatprep.subr.mxu0 0.0
    %129 = vmatpush1.msra.mxu0 0.0
    %130 = vmatprep.subr.mxu0 0.0
    %131 = vmatpush1.msra.mxu0 0.0
    %132 = vmatprep.subr.mxu0 0.0
    %133 = vmatpush1.msra.mxu0 0.0
    %134 = vmatprep.subr.mxu0 0.0
    %135 = vmatpush1.msra.mxu0 0.0
    %136 = vmatprep.subr.mxu0 0.0
    %137 = vmatpush1.msra.mxu0 0.0
    %138 = vmatprep.mubr.f32.mxu0 0.0
    %139 = vmatmul.mubr.f32.gmra.mrb[0].mxu0 %v72
    %v140 = vpop.f32.mrb[0].mxu0
    %v141 = vadd.f32 %v68, %v140
    %v142 = vpop.f32.mrb[0].mxu0
    %143 = vdwg.mxu0
    %v144 = vmax.f32 %v141, 0.0
    %v145 = vld [vmem:[#allocation7] sm:$0xff]
    %v146 = vld [vmem:[#allocation7 + $0x8] sm:$0xff]
    %v147 = vld [vmem:[#allocation7 + $0x10] sm:$0xff]
    %v148 = vld [vmem:[#allocation7 + $0x18] sm:$0xff]
    %v149 = vld [vmem:[#allocation7 + $0x20] sm:$0xff]
    %v150 = vld [vmem:[#allocation7 + $0x28] sm:$0xff]
    %v151 = vld [vmem:[#allocation7 + $0x30] sm:$0xff]
    %v152 = vld [vmem:[#allocation7 + $0x38] sm:$0xff]
    %v153 = vld [vmem:[%s4] sm:$0x1]
    %v155 = vlaneseq
    %v156 = vshrl.u32 %v155, 7
    %v157 = vsub.s32 0, %v156
    %v158 = vrot.slane %v153, %v157
    %vm160 = vcmask 523264
    %v162 = vsel %vm160, %v144, 0
    %164 = vmatprep.subr.mxu0 0.0
    %165 = vmatpush1.msra.mxu0 %v145
    %166 = vmatprep.subr.mxu0 0.0
    %167 = vmatpush1.msra.mxu0 %v146
    %168 = vmatprep.subr.mxu0 0.0
    %169 = vmatpush1.msra.mxu0 %v147
    %170 = vmatprep.subr.mxu0 0.0
    %171 = vmatpush1.msra.mxu0 %v148
    %172 = vmatprep.subr.mxu0 0.0
    %173 = vmatpush1.msra.mxu0 %v149
    %174 = vmatprep.subr.mxu0 0.0
    %175 = vmatpush1.msra.mxu0 %v150
    %176 = vmatprep.subr.mxu0 0.0
    %177 = vmatpush1.msra.mxu0 %v151
    %178 = vmatprep.subr.mxu0 0.0
    %179 = vmatpush1.msra.mxu0 %v152
    %180 = vmatprep.subr.mxu0 0.0
    %181 = vmatpush1.msra.mxu0 0.0
    %182 = vmatprep.subr.mxu0 0.0
    %183 = vmatpush1.msra.mxu0 0.0
    %184 = vmatprep.subr.mxu0 0.0
    %185 = vmatpush1.msra.mxu0 0.0
    %186 = vmatprep.subr.mxu0 0.0
    %187 = vmatpush1.msra.mxu0 0.0
    %188 = vmatprep.subr.mxu0 0.0
    %189 = vmatpush1.msra.mxu0 0.0
    %190 = vmatprep.subr.mxu0 0.0
    %191 = vmatpush1.msra.mxu0 0.0
    %192 = vmatprep.subr.mxu0 0.0
    %193 = vmatpush1.msra.mxu0 0.0
    %194 = vmatprep.subr.mxu0 0.0
    %195 = vmatpush1.msra.mxu0 0.0
    %196 = vmatprep.subr.mxu0 0.0
    %197 = vmatpush1.msra.mxu0 0.0
    %198 = vmatprep.subr.mxu0 0.0
    %199 = vmatpush1.msra.mxu0 0.0
    %200 = vmatprep.subr.mxu0 0.0
    %201 = vmatpush1.msra.mxu0 0.0
    %202 = vmatprep.subr.mxu0 0.0
    %203 = vmatpush1.msra.mxu0 0.0
    %204 = vmatprep.subr.mxu0 0.0
    %205 = vmatpush1.msra.mxu0 0.0
    %206 = vmatprep.subr.mxu0 0.0
    %207 = vmatpush1.msra.mxu0 0.0
    %208 = vmatprep.subr.mxu0 0.0
    %209 = vmatpush1.msra.mxu0 0.0
    %210 = vmatprep.subr.mxu0 0.0
    %211 = vmatpush1.msra.mxu0 0.0
    %212 = vmatprep.subr.mxu0 0.0
    %213 = vmatpush1.msra.mxu0 0.0
    %214 = vmatprep.subr.mxu0 0.0
    %215 = vmatpush1.msra.mxu0 0.0
    %216 = vmatprep.subr.mxu0 0.0
    %217 = vmatpush1.msra.mxu0 0.0
    %218 = vmatprep.subr.mxu0 0.0
    %219 = vmatpush1.msra.mxu0 0.0
    %220 = vmatprep.subr.mxu0 0.0
    %221 = vmatpush1.msra.mxu0 0.0
    %222 = vmatprep.subr.mxu0 0.0
    %223 = vmatpush1.msra.mxu0 0.0
    %224 = vmatprep.subr.mxu0 0.0
    %225 = vmatpush1.msra.mxu0 0.0
    %226 = vmatprep.subr.mxu0 0.0
    %227 = vmatpush1.msra.mxu0 0.0
    %228 = vmatprep.mubr.f32.mxu0 0.0
    %229 = vmatmul.mubr.f32.gmra.mrb[0].mxu0 %v162
    %v230 = vpop.f32.mrb[0].mxu0
    %v231 = vadd.f32 %v158, %v230
    %v232 = vpop.f32.mrb[0].mxu0
    %233 = vdwg.mxu0
    %v234 = vmax.f32 %v231, 0.0
    %235 = vst [vmem:[#allocation8] sm:$0xff] %v234
    // Predicated region
    $region34: #{latent_en_translator_fwd.1} parent=1 // pred_check
      _
    $region35: #{latent_en_translator_fwd.1} parent=1 // pred_check_branch
      %237 = sbr.rel (0) target = $region37
    $region36: #{latent_en_translator_fwd.1} parent=1 // pred_region
      %s239 = ssub.s32 128, 128
      %240 = vsyncadd [#allocation4], %s239
      %s242 = sshll.u32 [#allocation8], 4
      %s243 = int_to_ptr.vmem [resolvable:$true] %s242
      %245 = dma.vmem_to_hbm [thread:$0]  %s243, 128, %s5, [#allocation4]
    $region37: #{latent_en_translator_fwd.1} parent=1 // pred_fallthru
      _
    // Predicated region
    $region38: #{latent_en_translator_fwd.1} parent=1 // pred_check
      _
    $region39: #{latent_en_translator_fwd.1} parent=1 // pred_check_branch
      %247 = sbr.rel (0) target = $region41
    $region40: #{latent_en_translator_fwd.1} parent=1 // pred_region
      %248 = dma.done [#allocation4], 128
    $region41: #{latent_en_translator_fwd.1} parent=1 // pred_fallthru
      _
    %249 = vsyncpa [#allocation3], 1
    %250 = vsyncpa [#allocation6], 1
    %251 = vsyncpa [#allocation4], 1

</llo_original>
